<compile_context>
chip_gen: v5e
topology: v5e:2x2
jax: 0.10.0
libtpu: 0.0.40
codegen_flags: <defaults>
</compile_context>

<pallas_src>
import jax
import jax.numpy as jnp
from jax.experimental import pallas as pl
from jax.experimental.pallas import tpu as pltpu


def linear_vpu_kernel(x_ref, wt_ref, b_ref, o_ref):
    """y = x @ W^T + b with W^T passed pre-transposed as wt (IN, OUT).

    The IN(=5) contraction is unrolled into VPU broadcast-FMAs; no MXU push/pop.
      x_ref : (TB, IN)  VMEM
      wt_ref: (IN, OUT) VMEM
      b_ref : (1, OUT)  VMEM
      o_ref : (TB, OUT) VMEM
    """
    x = x_ref[...].astype(jnp.float32)
    wt = wt_ref[...].astype(jnp.float32)
    # Start the accumulator from the (sublane-broadcast) bias.
    acc = jnp.broadcast_to(b_ref[...].astype(jnp.float32), o_ref.shape)
    in_f = x_ref.shape[1]
    for k in range(in_f):  # static unroll, IN = 5
        # (TB,1) lane-broadcast * (1,OUT) sublane-broadcast -> (TB,OUT) FMA on the VPU
        acc = acc + x[:, k:k + 1] * wt[k:k + 1, :]
    o_ref[...] = acc.astype(o_ref.dtype)


def linear_pallas_small(x, w, b):
    """Gridless path for small batch: whole arrays resident in VMEM, one invocation."""
    B, in_f = x.shape
    out_f = w.shape[0]
    wt = w.T                     # transpose once in XLA, never inside the kernel
    b2d = b.reshape(1, out_f)
    return pl.pallas_call(
        linear_vpu_kernel,
        out_shape=jax.ShapeDtypeStruct((B, out_f), x.dtype),
        in_specs=[
            pl.BlockSpec(memory_space=pltpu.MemorySpace.VMEM),
            pl.BlockSpec(memory_space=pltpu.MemorySpace.VMEM),
            pl.BlockSpec(memory_space=pltpu.MemorySpace.VMEM),
        ],
        out_specs=pl.BlockSpec(memory_space=pltpu.MemorySpace.VMEM),
    )(x, wt, b2d)


def linear_pallas_batched(x, w, b, *, tb=512):
    """Large-batch path: tile only over B; weight/bias stay whole-grid-resident."""
    B, in_f = x.shape
    out_f = w.shape[0]
    wt = w.T
    b2d = b.reshape(1, out_f)
    tb = min(tb, max(8, (B // 8) * 8))   # keep the row block a multiple of 8
    pad = (-B) % tb
    xp = jnp.pad(x, ((0, pad), (0, 0))) if pad else x
    bp = xp.shape[0]
    out = pl.pallas_call(
        linear_vpu_kernel,
        out_shape=jax.ShapeDtypeStruct((bp, out_f), x.dtype),
        grid=(bp // tb,),
        in_specs=[
            pl.BlockSpec((tb, in_f), lambda i: (i, 0)),      # only x marches over B
            pl.BlockSpec((in_f, out_f), lambda i: (0, 0)),   # weight: same block every step
            pl.BlockSpec((1, out_f), lambda i: (0, 0)),      # bias:   same block every step
        ],
        out_specs=pl.BlockSpec((tb, out_f), lambda i: (i, 0)),
        compiler_params=pltpu.CompilerParams(
            dimension_semantics=("parallel",)),              # megacore sharding on v7x
    )(xp, wt, b2d)
    return out[:B] if pad else out


def init_params(key, in_f=5, out_f=2):
    # Deterministic init mimicking nn.Linear default (uniform in +/- 1/sqrt(in_f)).
    kw, kb = jax.random.split(key)
    bound = 1.0 / jnp.sqrt(jnp.float32(in_f))
    w = jax.random.uniform(kw, (out_f, in_f), jnp.float32, -bound, bound)
    b = jax.random.uniform(kb, (out_f,), jnp.float32, -bound, bound)
    return w, b


if __name__ == "__main__":
    key = jax.random.PRNGKey(0)
    k_x, k_p, k_x2 = jax.random.split(key, 3)

    IN, OUT = 5, 2
    w, b = init_params(k_p, IN, OUT)

    # Small batch (the module's natural shape): gridless single invocation.
    B = 8
    x = jax.random.normal(k_x, (B, IN), jnp.float32)
    out = jax.block_until_ready(linear_pallas_small(x, w, b))
    ref = x @ w.T + b
    assert out.shape == (B, OUT)
    assert jnp.allclose(out, ref, atol=1e-5, rtol=1e-5)

    # Large batch: batch-tiled grid, "parallel" batch axis, resident weights.
    B2 = 2048
    x2 = jax.random.normal(k_x2, (B2, IN), jnp.float32)
    out2 = jax.block_until_ready(linear_pallas_batched(x2, w, b, tb=512))
    ref2 = x2 @ w.T + b
    assert out2.shape == (B2, OUT)
    assert jnp.allclose(out2, ref2, atol=1e-5, rtol=1e-5)

    print("KERNEL_OK")
</pallas_src>

<mosaic_0001>
module attributes {stable_mosaic.version = 11 : i64} {
  func.func @linear_vpu_kernel(%arg0: memref<8x5xf32, #tpu.memory_space<vmem>>, %arg1: memref<5x2xf32, #tpu.memory_space<vmem>>, %arg2: memref<1x2xf32, #tpu.memory_space<vmem>>, %arg3: memref<8x2xf32, #tpu.memory_space<vmem>>) attributes {dimension_semantics = [], scalar_prefetch = 0 : i64, scratch_operands = 0 : i64, tpu.core_type = #tpu.core_type<tc>} {
    %c0 = arith.constant 0 : index
    %c0_0 = arith.constant 0 : index
    %0 = vector.load %arg0[%c0, %c0_0] : memref<8x5xf32, #tpu.memory_space<vmem>>, vector<8x5xf32>
    %c0_1 = arith.constant 0 : index
    %c0_2 = arith.constant 0 : index
    %1 = vector.load %arg1[%c0_1, %c0_2] : memref<5x2xf32, #tpu.memory_space<vmem>>, vector<5x2xf32>
    %c0_3 = arith.constant 0 : index
    %c0_4 = arith.constant 0 : index
    %2 = vector.load %arg2[%c0_3, %c0_4] : memref<1x2xf32, #tpu.memory_space<vmem>>, vector<1x2xf32>
    %3 = vector.shape_cast %2 : vector<1x2xf32> to vector<1x2xf32>
    %4 = vector.broadcast %3 : vector<1x2xf32> to vector<8x2xf32>
    %5 = vector.extract_strided_slice %0 {offsets = [0, 0], sizes = [8, 1], strides = [1, 1]} : vector<8x5xf32> to vector<8x1xf32>
    %6 = vector.extract_strided_slice %1 {offsets = [0, 0], sizes = [1, 2], strides = [1, 1]} : vector<5x2xf32> to vector<1x2xf32>
    %7 = vector.broadcast %5 : vector<8x1xf32> to vector<8x2xf32>
    %8 = vector.broadcast %6 : vector<1x2xf32> to vector<8x2xf32>
    %9 = arith.mulf %7, %8 : vector<8x2xf32>
    %10 = arith.addf %4, %9 : vector<8x2xf32>
    %11 = vector.extract_strided_slice %0 {offsets = [0, 1], sizes = [8, 1], strides = [1, 1]} : vector<8x5xf32> to vector<8x1xf32>
    %12 = vector.extract_strided_slice %1 {offsets = [1, 0], sizes = [1, 2], strides = [1, 1]} : vector<5x2xf32> to vector<1x2xf32>
    %13 = vector.broadcast %11 : vector<8x1xf32> to vector<8x2xf32>
    %14 = vector.broadcast %12 : vector<1x2xf32> to vector<8x2xf32>
    %15 = arith.mulf %13, %14 : vector<8x2xf32>
    %16 = arith.addf %10, %15 : vector<8x2xf32>
    %17 = vector.extract_strided_slice %0 {offsets = [0, 2], sizes = [8, 1], strides = [1, 1]} : vector<8x5xf32> to vector<8x1xf32>
    %18 = vector.extract_strided_slice %1 {offsets = [2, 0], sizes = [1, 2], strides = [1, 1]} : vector<5x2xf32> to vector<1x2xf32>
    %19 = vector.broadcast %17 : vector<8x1xf32> to vector<8x2xf32>
    %20 = vector.broadcast %18 : vector<1x2xf32> to vector<8x2xf32>
    %21 = arith.mulf %19, %20 : vector<8x2xf32>
    %22 = arith.addf %16, %21 : vector<8x2xf32>
    %23 = vector.extract_strided_slice %0 {offsets = [0, 3], sizes = [8, 1], strides = [1, 1]} : vector<8x5xf32> to vector<8x1xf32>
    %24 = vector.extract_strided_slice %1 {offsets = [3, 0], sizes = [1, 2], strides = [1, 1]} : vector<5x2xf32> to vector<1x2xf32>
    %25 = vector.broadcast %23 : vector<8x1xf32> to vector<8x2xf32>
    %26 = vector.broadcast %24 : vector<1x2xf32> to vector<8x2xf32>
    %27 = arith.mulf %25, %26 : vector<8x2xf32>
    %28 = arith.addf %22, %27 : vector<8x2xf32>
    %29 = vector.extract_strided_slice %0 {offsets = [0, 4], sizes = [8, 1], strides = [1, 1]} : vector<8x5xf32> to vector<8x1xf32>
    %30 = vector.extract_strided_slice %1 {offsets = [4, 0], sizes = [1, 2], strides = [1, 1]} : vector<5x2xf32> to vector<1x2xf32>
    %31 = vector.broadcast %29 : vector<8x1xf32> to vector<8x2xf32>
    %32 = vector.broadcast %30 : vector<1x2xf32> to vector<8x2xf32>
    %33 = arith.mulf %31, %32 : vector<8x2xf32>
    %34 = arith.addf %28, %33 : vector<8x2xf32>
    %c0_5 = arith.constant 0 : index
    %c0_6 = arith.constant 0 : index
    %35 = vector.load %arg3[%c0_5, %c0_6] : memref<8x2xf32, #tpu.memory_space<vmem>>, vector<8x2xf32>
    tpu.vector_store %arg3[%c0_5, %c0_6], %34 {strides = array<i32>} : memref<8x2xf32, #tpu.memory_space<vmem>>, vector<8x2xf32>,
    return
  }
}

</mosaic_0001>

<llo_original>
// kernel: tpu_custom_call.1
$region0: #{tpu_custom_call.1}
  #allocation0 [shape = 'u32[]', space=smem, size = 0x4, offset = 0x4, fixed_abs, tag = 'smem constant byte address 0x4 - core index']
  #allocation1 [shape = 'u32[72,128]{1,0:T(1,128)}', space=vmem, size = 0x9000, scoped, tag = 'internal scratch']
  %s0 = inlined_call_operand.vmem [shape: f32[8,5], index: 0, kind: input, shape index: {}]
  %s1 = inlined_call_operand.vmem [shape: f32[5,2], index: 1, kind: input, shape index: {}]
  %s2 = inlined_call_operand.vmem [shape: f32[1,2], index: 2, kind: input, shape index: {}]
  %s3 = inlined_call_operand.vmem [shape: f32[8,2], index: 3, kind: output, shape index: {}]
  %s4 = sld [smem:[#allocation0]]
  $region22: #{tpu_custom_call.1} parent=0
    _
  %s6 = ssub.s32 1, %s4
  %s7 = scalar_select 0, %s6, %s4
  // Predicated region
  $region2: #{tpu_custom_call.1} parent=0 // pred_check
    _
  $region3: #{tpu_custom_call.1} parent=0 // pred_check_branch
    %9 = sbr.rel (0) target = $region5
  $region4: #{tpu_custom_call.1} parent=0 // pred_region
    _
  $region5: #{tpu_custom_call.1} parent=0 // pred_fallthru
    _
  // Predicated region
  $region6: #{tpu_custom_call.1} parent=0 // pred_check
    _
  $region7: #{tpu_custom_call.1} parent=0 // pred_check_branch
    %11 = sbr.rel (0) target = $region9
  $region8: #{tpu_custom_call.1} parent=0 // pred_region
    _
  $region9: #{tpu_custom_call.1} parent=0 // pred_fallthru
    _
  // Predicated region
  $region10: #{tpu_custom_call.1} parent=0 // pred_check
    _
  $region11: #{tpu_custom_call.1} parent=0 // pred_check_branch
    %13 = sbr.rel (0) target = $region13
  $region12: #{tpu_custom_call.1} parent=0 // pred_region
    _
  $region13: #{tpu_custom_call.1} parent=0 // pred_fallthru
    _
  %v14 = vld [vmem:[%s0] sm:$0xff]
  %v15 = vld [vmem:[%s1] sm:$0x1f]
  %v16 = vld [vmem:[%s2] sm:$0x1]
  %v18 = vperm.slane %v16, 0
  %21 = vset.pattern.permute.xlu0 0
  %22 = vperm.xlu0 %21, %v14
  %v23 = vpop.permute.xlu0 %22
  %v25 = vperm.slane %v15, 0
  %v26 = vmul.f32 %v23, %v25
  %v27 = vadd.f32 %v18, %v26
  %28 = vset.pattern.permute.xlu0 1
  %29 = vperm.xlu0 %28, %v14
  %v30 = vpop.permute.xlu0 %29
  %v32 = vperm.slane %v15, 1
  %v33 = vmul.f32 %v30, %v32
  %v34 = vadd.f32 %v27, %v33
  %35 = vset.pattern.permute.xlu0 2
  %36 = vperm.xlu0 %35, %v14
  %v37 = vpop.permute.xlu0 %36
  %v39 = vperm.slane %v15, 2
  %v40 = vmul.f32 %v37, %v39
  %v41 = vadd.f32 %v34, %v40
  %42 = vset.pattern.permute.xlu0 3
  %43 = vperm.xlu0 %42, %v14
  %v44 = vpop.permute.xlu0 %43
  %v46 = vperm.slane %v15, 3
  %v47 = vmul.f32 %v44, %v46
  %v48 = vadd.f32 %v41, %v47
  %49 = vset.pattern.permute.xlu0 4
  %50 = vperm.xlu0 %49, %v14
  %v51 = vpop.permute.xlu0 %50
  %v53 = vperm.slane %v15, 4
  %v54 = vmul.f32 %v51, %v53
  %v55 = vadd.f32 %v48, %v54
  %vm56 = vcmask 15360
  %57 = vst.msk [vmem:[%s3] sm:$0xff] %vm56, %v55
  // Predicated region
  $region14: #{tpu_custom_call.1} parent=0 // pred_check
    _
  $region15: #{tpu_custom_call.1} parent=0 // pred_check_branch
    %59 = sbr.rel (0) target = $region17
  $region16: #{tpu_custom_call.1} parent=0 // pred_region
    _
  $region17: #{tpu_custom_call.1} parent=0 // pred_fallthru
    _
  // Predicated region
  $region18: #{tpu_custom_call.1} parent=0 // pred_check
    _
  $region19: #{tpu_custom_call.1} parent=0 // pred_check_branch
    %61 = sbr.rel (0) target = $region21
  $region20: #{tpu_custom_call.1} parent=0 // pred_region
    _
  $region21: #{tpu_custom_call.1} parent=0 // pred_fallthru
    _

</llo_original>
